<compile_context>
chip_gen: v6e
topology: v6e:2x2x1
jax: 0.10.0
libtpu: 0.0.40
codegen_flags: <defaults>
</compile_context>

<pallas_src>
import jax
import jax.numpy as jnp
import numpy as np
from jax.experimental import pallas as pl
from jax.experimental.pallas import tpu as pltpu


def _round_up(x, m):
    return ((x + m - 1) // m) * m


# ----------------------------------------------------------------------------
# Pallas implementation of GNNLayer.forward
# ----------------------------------------------------------------------------
def gnn_layer(lap, trust, add, feats, params, *, tm=128,
              matmul_dtype=jnp.float32, vmem_limit_bytes=None):
    f32 = jnp.float32
    n, in_f = feats.shape
    out_f = params["w_lin"].shape[1]

    P = _round_up(out_f, 128)        # lane-dense padded feature width
    TM = _round_up(max(8, tm), 8)    # row tile (sublane aligned)
    n_pad = _round_up(n, TM)
    nt = n_pad // TM

    # ------------------ parameter packing / padding (layout plumbing) -------
    def pad_cols(w):                 # (r, out_f) -> (r, P)
        return jnp.pad(w.astype(f32), ((0, 0), (0, P - out_f)))

    def pad_row(b):                  # (out_f,) -> (1, P)
        return pad_cols(b.astype(f32).reshape(1, out_f))

    def pad_att(w):                  # (out_f, out_f) -> (P, P)
        return jnp.pad(w.astype(f32), ((0, P - out_f), (0, P - out_f)))

    w_lin_p = pad_cols(params["w_lin"])              # (in_f, P)
    w_int_p = pad_cols(params["w_int"])              # (in_f, P)

    # branch order everywhere: 0 = main (lap), 1 = add, 2 = trust
    wa = jnp.stack([pad_att(params["w_att_main"]),
                    pad_att(params["w_att_add"]),
                    pad_att(params["w_att_trust"])])          # (3, P, P)

    # all row-sized params packed into one (8, P) tile -> single small DMA
    small_rows = jnp.concatenate([
        pad_row(params["b_lin"] + params["b_int"]),  # row 0: fused bias b_lin+b_int
        pad_row(params["b_att_main"]),               # rows 1..3: attention biases
        pad_row(params["b_att_add"]),
        pad_row(params["b_att_trust"]),
        pad_row(params["a_main"][:, 0]),             # rows 4..6: attention vectors a^T
        pad_row(params["a_add"][:, 0]),
        pad_row(params["a_trust"][:, 0]),
        jnp.zeros((1, P), f32),                      # row 7: pad to a full (8,128) tile
    ], axis=0)                                       # (8, P)

    # ------------------ graph inputs: pad + merge branch row-tiles ----------
    feats_p = jnp.pad(feats.astype(f32), ((0, n_pad - n), (0, 0)))   # (n_pad, in_f)
    adj = jnp.stack([lap, add, trust]).astype(f32)                   # (3, n, n)
    adj = jnp.pad(adj, ((0, 0), (0, n_pad - n), (0, n_pad - n)))
    # (nt, 3*TM, n_pad): row tile i holds [lap_i ; add_i ; trust_i] stacked so
    # the kernel performs ONE (3*TM, N) @ (N, 2P) MXU pass per tile.
    adj = adj.reshape(3, nt, TM, n_pad).transpose(1, 0, 2, 3).reshape(nt, 3 * TM, n_pad)

    cparams = pltpu.CompilerParams(dimension_semantics=("parallel",),
                                   vmem_limit_bytes=vmem_limit_bytes)

    # ================== kernel 0: hoisted projections =======================
    #   fg = [ feats @ W_lin | (feats*feats) @ W_int ]   (computed once, not 3x)
    def project_kernel(x_ref, wl_ref, wi_ref, fg_ref):
        x = x_ref[...]
        fg_ref[:, :P] = jnp.dot(x, wl_ref[...], preferred_element_type=f32)
        fg_ref[:, P:] = jnp.dot(x * x, wi_ref[...], preferred_element_type=f32)

    fg = pl.pallas_call(
        project_kernel,
        grid=(nt,),
        in_specs=[pl.BlockSpec((TM, in_f), lambda i: (i, 0)),
                  pl.BlockSpec((in_f, P), lambda i: (0, 0)),
                  pl.BlockSpec((in_f, P), lambda i: (0, 0))],
        out_specs=pl.BlockSpec((TM, 2 * P), lambda i: (i, 0)),
        out_shape=jax.ShapeDtypeStruct((n_pad, 2 * P), f32),
        compiler_params=cparams,
    )(feats_p, w_lin_p, w_int_p)

    # ================== kernel 1: propagate + attention partials ============
    def propagate_kernel(adj_ref, fg_ref, wa_ref, small_ref, x12_ref, att_ref):
        i = pl.program_id(0)
        row0 = pl.multiple_of(i * TM, TM)

        adj_blk = adj_ref[0]                                   # (3*TM, n_pad)
        prod = jnp.dot(adj_blk.astype(matmul_dtype),
                       fg_ref[...].astype(matmul_dtype),
                       preferred_element_type=f32)             # (3*TM, 2P)

        fw_rows = fg_ref[pl.ds(row0, TM), pl.ds(0, P)]         # fW rows (the "+I" term)
        sm = small_ref[...]                                    # (8, P)
        b12 = sm[0:1, :]                                       # b_lin + b_int

        if n != n_pad:   # trace-time branch: mask rows past the true node count
            ridx = row0 + jax.lax.broadcasted_iota(jnp.int32, (TM, 1), 0)
            valid = (ridx < n).astype(f32)

        att_rows = []
        for b in range(3):
            pb = prod[b * TM:(b + 1) * TM, :]
            # x1 + x2 = (L+I)@feats@W_lin + b_lin + L@(f*f)@W_int + b_int
            x12 = pb[:, :P] + pb[:, P:] + fw_rows + b12
            x12_ref[0, b * TM:(b + 1) * TM, :] = x12
            att = jnp.tanh(jnp.dot(x12, wa_ref[b], preferred_element_type=f32)
                           + sm[1 + b:2 + b, :]) * sm[4 + b:5 + b, :]
            if n != n_pad:
                att = att * valid
            att_rows.append(jnp.sum(att, axis=0, keepdims=True))        # (1, P)
        att_ref[0] = jnp.concatenate(att_rows + [jnp.zeros((5, P), f32)], axis=0)

    x12, att_part = pl.pallas_call(
        propagate_kernel,
        grid=(nt,),
        in_specs=[pl.BlockSpec((1, 3 * TM, n_pad), lambda i: (i, 0, 0)),
                  pl.BlockSpec((n_pad, 2 * P), lambda i: (0, 0)),
                  pl.BlockSpec((3, P, P), lambda i: (0, 0, 0)),
                  pl.BlockSpec((8, P), lambda i: (0, 0))],
        out_specs=[pl.BlockSpec((1, 3 * TM, P), lambda i: (i, 0, 0)),
                   pl.BlockSpec((1, 8, P), lambda i: (i, 0, 0))],
        out_shape=(jax.ShapeDtypeStruct((nt, 3 * TM, P), f32),
                   jax.ShapeDtypeStruct((nt, 8, P), f32)),
        compiler_params=cparams,
    )(adj, fg, wa, small_rows)

    # 3-scalar attention weights + softmax, outside the tile loop (negligible)
    w = jnp.sum(att_part[:, :3, :], axis=(0, 2)) / n        # [w_main, w_add, w_trust]
    beta = jax.nn.softmax(w).astype(f32)                    # (3,)

    # ================== kernel 2: beta-weighted combine =====================
    def combine_kernel(beta_ref, x12_ref, out_ref):
        x = x12_ref[0]                                       # (3*TM, P)
        out_ref[...] = (beta_ref[0] * x[0:TM, :]
                        + beta_ref[1] * x[TM:2 * TM, :]
                        + beta_ref[2] * x[2 * TM:3 * TM, :])

    out_pad = pl.pallas_call(
        combine_kernel,
        grid=(nt,),
        in_specs=[pl.BlockSpec(memory_space=pltpu.MemorySpace.SMEM),   # beta (3,)
                  pl.BlockSpec((1, 3 * TM, P), lambda i: (i, 0, 0))],
        out_specs=pl.BlockSpec((TM, P), lambda i: (i, 0)),
        out_shape=jax.ShapeDtypeStruct((n_pad, P), f32),
        compiler_params=cparams,
    )(beta, x12)

    return out_pad[:n, :out_f]


# ----------------------------------------------------------------------------
# Pure-JAX reference mirroring the PyTorch module (for correctness check)
# ----------------------------------------------------------------------------
def gnn_layer_ref(lap, trust, add, selfloop, feats, p):
    inter = feats * feats

    def lin(x, w, b):
        return x @ w + b

    def branch(La, Lb, w_att, b_att, a):
        x1 = lin(La @ feats, p["w_lin"], p["b_lin"])
        x2 = lin(Lb @ inter, p["w_int"], p["b_int"])
        w = jnp.mean(jnp.tanh(lin(x1 + x2, w_att, b_att)) @ a)
        return x1, x2, w

    m1, m2, wm = branch(lap + selfloop, lap,
                        p["w_att_main"], p["b_att_main"], p["a_main"])
    t1, t2, wt = branch(trust + selfloop, trust,
                        p["w_att_trust"], p["b_att_trust"], p["a_trust"])
    a1, a2, wad = branch(add + selfloop, add,
                         p["w_att_add"], p["b_att_add"], p["a_add"])

    beta = jax.nn.softmax(jnp.stack([wm, wad, wt]))   # order: main, add, trust
    return beta[0] * (m1 + m2) + beta[1] * (a1 + a2) + beta[2] * (t1 + t2)


# ----------------------------------------------------------------------------
# Deterministic parameter init + example run
# ----------------------------------------------------------------------------
def xavier_uniform(key, shape):
    bound = float(np.sqrt(6.0 / (shape[0] + shape[1])))
    return jax.random.uniform(key, shape, jnp.float32, -bound, bound)


def make_params(key, in_f, out_f):
    # The module's attention Linear is nn.Linear(inF, outF) applied to an
    # outF-dim input, which only works when inF == outF (as in the original).
    assert in_f == out_f, "GNNLayer attention requires inF == outF"
    ks = jax.random.split(key, 16)

    def bias(k):
        return 0.01 * jax.random.normal(k, (out_f,), jnp.float32)

    return {
        "w_lin": xavier_uniform(ks[0], (in_f, out_f)),        "b_lin": bias(ks[1]),
        "w_int": xavier_uniform(ks[2], (in_f, out_f)),        "b_int": bias(ks[3]),
        "w_att_main": xavier_uniform(ks[4], (out_f, out_f)),  "b_att_main": bias(ks[5]),
        "w_att_add": xavier_uniform(ks[6], (out_f, out_f)),   "b_att_add": bias(ks[7]),
        "w_att_trust": xavier_uniform(ks[8], (out_f, out_f)), "b_att_trust": bias(ks[9]),
        "a_main": xavier_uniform(ks[10], (out_f, 1)),
        "a_add": xavier_uniform(ks[11], (out_f, 1)),
        "a_trust": xavier_uniform(ks[12], (out_f, 1)),
    }


if __name__ == "__main__":
    # N not a multiple of the row tile -> exercises the padding / masking path.
    N, IN_F, OUT_F = 200, 32, 32

    key = jax.random.PRNGKey(0)
    k_param, k_feat, k_lap, k_trust, k_add = jax.random.split(key, 5)

    params = make_params(k_param, IN_F, OUT_F)
    feats = jax.random.normal(k_feat, (N, IN_F), jnp.float32)

    def row_normalized(k):
        m = jax.random.uniform(k, (N, N), jnp.float32)
        return m / jnp.sum(m, axis=1, keepdims=True)

    lap = row_normalized(k_lap)
    trust = row_normalized(k_trust)
    addr = row_normalized(k_add)
    selfloop = jnp.eye(N, dtype=jnp.float32)   # only needed by the reference

    out = gnn_layer(lap, trust, addr, feats, params, tm=128)
    out = jax.block_until_ready(out)
    assert out.shape == (N, OUT_F)

    ref = gnn_layer_ref(lap, trust, addr, selfloop, feats, params)
    np.testing.assert_allclose(np.asarray(out), np.asarray(ref),
                               rtol=1e-5, atol=1e-5)

    print("KERNEL_OK")
</pallas_src>

<mosaic_0001>
module attributes {stable_mosaic.version = 11 : i64} {
  func.func @project_kernel(%arg0: i32, %arg1: memref<128x32xf32, #tpu.memory_space<vmem>>, %arg2: memref<32x128xf32, #tpu.memory_space<vmem>>, %arg3: memref<32x128xf32, #tpu.memory_space<vmem>>, %arg4: memref<128x256xf32, #tpu.memory_space<vmem>>) attributes {dimension_semantics = [#tpu.dimension_semantics<parallel>], iteration_bounds = array<i64: 2>, scalar_prefetch = 0 : i64, scratch_operands = 0 : i64, tpu.core_type = #tpu.core_type<tc>, window_params = [{transform_indices = @transform_0, window_bounds = array<i64: 128, 32>}, {pipeline_mode = #tpu.pipeline_mode<synchronous>, transform_indices = @transform_1, window_bounds = array<i64: 32, 128>}, {pipeline_mode = #tpu.pipeline_mode<synchronous>, transform_indices = @transform_2, window_bounds = array<i64: 32, 128>}, {transform_indices = @transform_3, window_bounds = array<i64: 128, 256>}]} {
    %c0 = arith.constant 0 : index
    %c0_0 = arith.constant 0 : index
    %0 = vector.load %arg1[%c0, %c0_0] : memref<128x32xf32, #tpu.memory_space<vmem>>, vector<128x32xf32>
    %c0_1 = arith.constant 0 : index
    %c0_2 = arith.constant 0 : index
    %1 = vector.load %arg2[%c0_1, %c0_2] : memref<32x128xf32, #tpu.memory_space<vmem>>, vector<32x128xf32>
    %cst = arith.constant dense<0.000000e+00> : vector<128x128xf32>
    %2 = tpu.matmul %0, %1, %cst {dimension_numbers = #tpu.dot_dimension_numbers<[1], [0], [0], [1], [0, 0, 1, 1], [], []>} : vector<128x32xf32>, vector<32x128xf32>, vector<128x128xf32> -> vector<128x128xf32>
    %c0_3 = arith.constant 0 : index
    %c0_4 = arith.constant 0 : index
    %3 = vector.load %arg4[%c0_3, %c0_4] : memref<128x256xf32, #tpu.memory_space<vmem>>, vector<128x128xf32>
    tpu.vector_store %arg4[%c0_3, %c0_4], %2 {strides = array<i32>} : memref<128x256xf32, #tpu.memory_space<vmem>>, vector<128x128xf32>,
    %4 = arith.mulf %0, %0 : vector<128x32xf32>
    %c0_5 = arith.constant 0 : index
    %c0_6 = arith.constant 0 : index
    %5 = vector.load %arg3[%c0_5, %c0_6] : memref<32x128xf32, #tpu.memory_space<vmem>>, vector<32x128xf32>
    %cst_7 = arith.constant dense<0.000000e+00> : vector<128x128xf32>
    %6 = tpu.matmul %4, %5, %cst_7 {dimension_numbers = #tpu.dot_dimension_numbers<[1], [0], [0], [1], [0, 0, 1, 1], [], []>} : vector<128x32xf32>, vector<32x128xf32>, vector<128x128xf32> -> vector<128x128xf32>
    %c0_8 = arith.constant 0 : index
    %c128 = arith.constant 128 : index
    %7 = vector.load %arg4[%c0_8, %c128] : memref<128x256xf32, #tpu.memory_space<vmem>>, vector<128x128xf32>
    tpu.vector_store %arg4[%c0_8, %c128], %6 {strides = array<i32>} : memref<128x256xf32, #tpu.memory_space<vmem>>, vector<128x128xf32>,
    return
  }
  func.func @transform_0(%arg0: i32) -> (i32, i32) {
    %c0_i32 = arith.constant 0 : i32
    %c0_i32_0 = arith.constant 0 : i32
    return %arg0, %c0_i32 : i32, i32
  }
  func.func @transform_1(%arg0: i32) -> (i32, i32) {
    %c0_i32 = arith.constant 0 : i32
    %c0_i32_0 = arith.constant 0 : i32
    %c0_i32_1 = arith.constant 0 : i32
    return %c0_i32, %c0_i32_0 : i32, i32
  }
  func.func @transform_2(%arg0: i32) -> (i32, i32) {
    %c0_i32 = arith.constant 0 : i32
    %c0_i32_0 = arith.constant 0 : i32
    %c0_i32_1 = arith.constant 0 : i32
    return %c0_i32, %c0_i32_0 : i32, i32
  }
  func.func @transform_3(%arg0: i32) -> (i32, i32) {
    %c0_i32 = arith.constant 0 : i32
    %c0_i32_0 = arith.constant 0 : i32
    return %arg0, %c0_i32 : i32, i32
  }
}

</mosaic_0001>

<llo_original>
// kernel: tpu_custom_call.1
$region0: #{tpu_custom_call.1}
  #allocation0 [shape = 'u32[]', space=smem, size = 0x4, offset = 0x4, fixed_abs, tag = 'smem constant byte address 0x4 - core index']
  #allocation1 [shape = 'u32[144,128]{1,0:T(1,128)}', space=vmem, size = 0x12000, scoped, tag = 'internal scratch']
  %s0 = inlined_call_operand.vmem [shape: f32[256,32], index: 0, kind: input, shape index: {}]
  %s1 = inlined_call_operand.vmem [shape: f32[32,128], index: 1, kind: input, shape index: {}]
  %s2 = inlined_call_operand.vmem [shape: f32[32,128], index: 2, kind: input, shape index: {}]
  %s3 = inlined_call_operand.hbm [shape: f32[256,256], index: 3, kind: output, shape index: {}]
  %s4 = sld [smem:[#allocation0]]
  $region45: #{tpu_custom_call.1} parent=0
    _
  %s6 = ssub.s32 1, %s4
  %s7 = scalar_select 0, %s6, %s4
  $region1: #{tpu_custom_call.1} parent=0
    #allocation2 [shape = 'u8[262144]{0}', space=vmem, size = 0x40000, scoped, tag = 'output window, operand 0']
    #allocation3 [shape = 's32[2]{0}', space=sflag, size = 0x8, scoped, tag = 'scoped memory for tpu_custom_call.1']
    %8 = vsyncpa [#allocation3], 0
    %s9 = scalar_lea.sflag [#allocation3], 1
    %10 = vsyncpa %s9, 0
    loop: start=0, step=1, limit=4
    $region2: #{tpu_custom_call.1} parent=1 // loop_pre_header
      _
    $region3: #{tpu_custom_call.1} parent=1 // loop_header
      %s12 = sphi 0, %s16
      %p13 = scmp.ge.s32.totalorder %s12, 4
      %s22 = sphi 0, %s24
      %s25 = sphi 0, %s22
      %s26 = sphi 0, %s25
      %s42 = sphi 0, %s26
      %s46 = sphi 0, %s46
      %s48 = sphi 0, %s46
      %s49 = sphi 0, %s48
      %s63 = sphi 0, %s49
      %s67 = sphi 0, %s67
      %s69 = sphi 0, %s67
      %s70 = sphi 0, %s69
      %s84 = sphi 0, %s70
      %s90 = sphi 0, %s92
      %s93 = sphi 0, %s90
      %s94 = sphi 0, %s93
      %s110 = sphi 0, %s94
    $region4: #{tpu_custom_call.1} parent=1 // loop_header_branch
      %15 = sbr.rel (%p13) target = $region8
    $region5: #{tpu_custom_call.1} parent=1 // loop_body
      %s17 = ssub.s32 %s12, 1
      %s18 = ssub.s32 %s12, 2
      %s19 = sadd.s32 %s12, 1
      %s20 = ssub.s32 %s12, %s19
      %p21 = scmp.eq.s32.totalorder %s20, 0
      %s23 = sadd.s32 %s22, 1
      %s24 = scalar_select %p21, %s22, %s23
      %p27 = pneg %p21
      %p28 = scmp.eq.s32.totalorder %s12, 1
      %p29 = por %p27, %p28
      %p30 = scmp.ne.s32.totalorder %s22, %s25
      %p31 = scmp.eq.s32.totalorder %s12, 0
      %p32 = por %p30, %p31
      %p33 = scmp.ne.s32.totalorder %s22, %s25
      %p34 = scmp.eq.s32.totalorder %s17, 1
      %p35 = por %p33, %p34
      %p36 = scmp.ne.s32.totalorder %s25, %s26
      %p37 = scmp.eq.s32.totalorder %s17, 0
      %p38 = por %p36, %p37
      %p39 = scmp.ne.s32.totalorder %s25, %s26
      %p40 = scmp.eq.s32.totalorder %s18, 1
      %p41 = por %p39, %p40
      %p43 = scmp.ne.s32.totalorder %s26, %s42
      %p44 = scmp.eq.s32.totalorder %s18, 0
      %p45 = por %p43, %p44
      %s47 = sadd.s32 %s46, 1
      %p50 = scmp.eq.s32.totalorder %s12, 1
      %p51 = scmp.ne.s32.totalorder %s46, %s48
      %p52 = scmp.eq.s32.totalorder %s12, 0
      %p53 = por %p51, %p52
      %p54 = scmp.ne.s32.totalorder %s46, %s48
      %p55 = scmp.eq.s32.totalorder %s17, 1
      %p56 = por %p54, %p55
      %p57 = scmp.ne.s32.totalorder %s48, %s49
      %p58 = scmp.eq.s32.totalorder %s17, 0
      %p59 = por %p57, %p58
      %p60 = scmp.ne.s32.totalorder %s48, %s49
      %p61 = scmp.eq.s32.totalorder %s18, 1
      %p62 = por %p60, %p61
      %p64 = scmp.ne.s32.totalorder %s49, %s63
      %p65 = scmp.eq.s32.totalorder %s18, 0
      %p66 = por %p64, %p65
      %s68 = sadd.s32 %s67, 1
      %p71 = scmp.eq.s32.totalorder %s12, 1
      %p72 = scmp.ne.s32.totalorder %s67, %s69
      %p73 = scmp.eq.s32.totalorder %s12, 0
      %p74 = por %p72, %p73
      %p75 = scmp.ne.s32.totalorder %s67, %s69
      %p76 = scmp.eq.s32.totalorder %s17, 1
      %p77 = por %p75, %p76
      %p78 = scmp.ne.s32.totalorder %s69, %s70
      %p79 = scmp.eq.s32.totalorder %s17, 0
      %p80 = por %p78, %p79
      %p81 = scmp.ne.s32.totalorder %s69, %s70
      %p82 = scmp.eq.s32.totalorder %s18, 1
      %p83 = por %p81, %p82
      %p85 = scmp.ne.s32.totalorder %s70, %s84
      %p86 = scmp.eq.s32.totalorder %s18, 0
      %p87 = por %p85, %p86
      %s88 = ssub.s32 %s12, %s19
      %p89 = scmp.eq.s32.totalorder %s88, 0
      %s91 = sadd.s32 %s90, 1
      %s92 = scalar_select %p89, %s90, %s91
      %p95 = pneg %p89
      %p96 = scmp.eq.s32.totalorder %s12, 1
      %p97 = por %p95, %p96
      %p98 = scmp.ne.s32.totalorder %s90, %s93
      %p99 = scmp.eq.s32.totalorder %s12, 0
      %p100 = por %p98, %p99
      %p101 = scmp.ne.s32.totalorder %s90, %s93
      %p102 = scmp.eq.s32.totalorder %s17, 1
      %p103 = por %p101, %p102
      %p104 = scmp.ne.s32.totalorder %s93, %s94
      %p105 = scmp.eq.s32.totalorder %s17, 0
      %p106 = por %p104, %p105
      %p107 = scmp.ne.s32.totalorder %s93, %s94
      %p108 = scmp.eq.s32.totalorder %s18, 1
      %p109 = por %p107, %p108
      %p111 = scmp.ne.s32.totalorder %s94, %s110
      %p112 = scmp.eq.s32.totalorder %s18, 0
      %p113 = por %p111, %p112
      %p114 = scmp.le.s32.totalorder 1, %s12
      %p115 = scmp.lt.s32.totalorder %s12, 3
      %p116 = pnand %p114, %p115
      %p117 = pneg %p116
      // Predicated region
      $region9: #{tpu_custom_call.1} parent=5 // pred_check
        _
      $region10: #{tpu_custom_call.1} parent=5 // pred_check_branch
        %119 = sbr.rel (%p116) target = $region12
      $region11: #{tpu_custom_call.1} parent=5 // pred_region
        %s120 = ssub.s32 %s12, 1
        // Predicated region
        $region13: #{tpu_custom_call.1} parent=11 // pred_check
          %p121 = pneg %p59
        $region14: #{tpu_custom_call.1} parent=11 // pred_check_branch
          %123 = sbr.rel (%p121) target = $region16
        $region15: #{tpu_custom_call.1} parent=11 // pred_region
          _
        $region16: #{tpu_custom_call.1} parent=11 // pred_fallthru
          _
        // Predicated region
        $region17: #{tpu_custom_call.1} parent=11 // pred_check
          %p124 = pneg %p80
        $region18: #{tpu_custom_call.1} parent=11 // pred_check_branch
          %126 = sbr.rel (%p124) target = $region20
        $region19: #{tpu_custom_call.1} parent=11 // pred_region
          _
        $region20: #{tpu_custom_call.1} parent=11 // pred_fallthru
          _
      $region12: #{tpu_custom_call.1} parent=5 // pred_fallthru
        _
      %p127 = scmp.lt.s32.totalorder %s12, 2
      // Predicated region
      $region21: #{tpu_custom_call.1} parent=5 // pred_check
        %p128 = pneg %p127
      $region22: #{tpu_custom_call.1} parent=5 // pred_check_branch
        %130 = sbr.rel (%p128) target = $region24
      $region23: #{tpu_custom_call.1} parent=5 // pred_region
        // Predicated region
        $region25: #{tpu_custom_call.1} parent=23 // pred_check
          %p131 = pneg %p32
        $region26: #{tpu_custom_call.1} parent=23 // pred_check_branch
          %133 = sbr.rel (%p131) target = $region28
        $region27: #{tpu_custom_call.1} parent=23 // pred_region
          %s134 = smul.u32 16, %s12
          %p135 = scmp.lt.s32.totalorder %s134, 31
          %s136 = scalar_select %p135, %s134, 31
          %s137 = smul.addr %s136, 8
          %s138 = scalar_lea.vmem %s0, %s137
          %s139 = smul.u32 16, %s12
        $region28: #{tpu_custom_call.1} parent=23 // pred_fallthru
          _
      $region24: #{tpu_custom_call.1} parent=5 // pred_fallthru
        _
      %p140 = scmp.le.s32.totalorder 1, %s12
      %p141 = scmp.lt.s32.totalorder %s12, 3
      %p142 = pnand %p140, %p141
      %p143 = pneg %p142
      // Predicated region
      $region29: #{tpu_custom_call.1} parent=5 // pred_check
        _
      $region30: #{tpu_custom_call.1} parent=5 // pred_check_branch
        %145 = sbr.rel (%p142) target = $region32
      $region31: #{tpu_custom_call.1} parent=5 // pred_region
        %s146 = ssub.s32 %s12, 1
        %s147 = smul.u32 16, %s17
        %p148 = scmp.lt.s32.totalorder %s147, 31
        %s149 = scalar_select %p148, %s147, 31
        %s150 = smul.addr %s149, 8
        %s151 = scalar_lea.vmem %s0, %s150
        %p152 = pneg %p38
        %p153 = pneg %p35
        %p154 = pneg %p59
        %p155 = pneg %p56
        %p156 = pneg %p80
        %p157 = pneg %p77
        %p158 = pneg %p106
        %p159 = pneg %p103
        %s160 = sand.u32 %s93, 1
        %s161 = scalar_lea.sflag [#allocation3], %s160
        %s162 = sand.u32 %s93, 1
        %s163 = smul.addr %s162, 256
        %s164 = scalar_lea.vmem [#allocation2], %s163
        %s165 = smul.u32 16, %s17
        %p166 = scmp.lt.s32.totalorder %s165, 31
        %s167 = scalar_select %p166, %s165, 31
        %s168 = smul.addr %s167, 8
        %s169 = scalar_lea.vmem %s0, %s168
        %s170 = smul.u32 16, %s17
        %s171 = smul.u32 16, %s17
        %v172 = vld [vmem:[%s169] sm:$0xff]
        %v173 = vld [vmem:[%s169 + $0x8] sm:$0xff]
        %v174 = vld [vmem:[%s169 + $0x10] sm:$0xff]
        %v175 = vld [vmem:[%s169 + $0x18] sm:$0xff]
        %v176 = vld [vmem:[%s169 + $0x20] sm:$0xff]
        %v177 = vld [vmem:[%s169 + $0x28] sm:$0xff]
        %v178 = vld [vmem:[%s169 + $0x30] sm:$0xff]
        %v179 = vld [vmem:[%s169 + $0x38] sm:$0xff]
        %v180 = vld [vmem:[%s169 + $0x40] sm:$0xff]
        %v181 = vld [vmem:[%s169 + $0x48] sm:$0xff]
        %v182 = vld [vmem:[%s169 + $0x50] sm:$0xff]
        %v183 = vld [vmem:[%s169 + $0x58] sm:$0xff]
        %v184 = vld [vmem:[%s169 + $0x60] sm:$0xff]
        %v185 = vld [vmem:[%s169 + $0x68] sm:$0xff]
        %v186 = vld [vmem:[%s169 + $0x70] sm:$0xff]
        %v187 = vld [vmem:[%s169 + $0x78] sm:$0xff]
        %v188 = vld [vmem:[%s1] sm:$0xff]
        %v189 = vld [vmem:[%s1 + $0x8] sm:$0xff]
        %v190 = vld [vmem:[%s1 + $0x10] sm:$0xff]
        %v191 = vld [vmem:[%s1 + $0x18] sm:$0xff]
        %vm192 = vcmask 261120
        %v194 = vsel %vm192, %v172, 0
        %v197 = vsel %vm192, %v173, 0
        %v200 = vsel %vm192, %v174, 0
        %v203 = vsel %vm192, %v175, 0
        %v206 = vsel %vm192, %v176, 0
        %v209 = vsel %vm192, %v177, 0
        %v212 = vsel %vm192, %v178, 0
        %v215 = vsel %vm192, %v179, 0
        %v218 = vsel %vm192, %v180, 0
        %v221 = vsel %vm192, %v181, 0
        %v224 = vsel %vm192, %v182, 0
        %v227 = vsel %vm192, %v183, 0
        %v230 = vsel %vm192, %v184, 0
        %v233 = vsel %vm192, %v185, 0
        %v236 = vsel %vm192, %v186, 0
        %v239 = vsel %vm192, %v187, 0
        %241 = vmatprep.subr.mxu0 0.0
        %242 = vmatpush1.msra.mxu0 0.0
        %243 = vmatprep.subr.mxu0 0.0
        %244 = vmatpush1.msra.mxu0 0.0
        %245 = vmatprep.subr.mxu0 0.0
        %246 = vmatpush1.msra.mxu0 0.0
        %247 = vmatprep.subr.mxu0 0.0
        %248 = vmatpush1.msra.mxu0 0.0
        %249 = vmatprep.subr.mxu0 0.0
        %250 = vmatpush1.msra.mxu0 0.0
        %251 = vmatprep.subr.mxu0 0.0
        %252 = vmatpush1.msra.mxu0 0.0
        %253 = vmatprep.subr.mxu0 0.0
        %254 = vmatpush1.msra.mxu0 0.0
        %255 = vmatprep.subr.mxu0 0.0
        %256 = vmatpush1.msra.mxu0 0.0
        %257 = vmatprep.subr.mxu0 0.0
        %258 = vmatpush1.msra.mxu0 0.0
        %259 = vmatprep.subr.mxu0 0.0
        %260 = vmatpush1.msra.mxu0 0.0
        %261 = vmatprep.subr.mxu0 0.0
        %262 = vmatpush1.msra.mxu0 0.0
        %263 = vmatprep.subr.mxu0 0.0
        %264 = vmatpush1.msra.mxu0 0.0
        %265 = vmatprep.subr.mxu0 0.0
        %266 = vmatpush1.msra.mxu0 %v191
        %267 = vmatprep.subr.mxu0 0.0
        %268 = vmatpush1.msra.mxu0 %v190
        %269 = vmatprep.subr.mxu0 0.0
        %270 = vmatpush1.msra.mxu0 %v189
        %271 = vmatprep.subr.mxu0 0.0
        %272 = vmatpush1.msra.mxu0 %v188
        %273 = vmatprep.subr.mxu0 0.0
        %274 = vmatpush2.msra.mxu0 0.0
        %275 = vmatprep.subr.mxu0 0.0
        %276 = vmatpush2.msra.mxu0 0.0
        %277 = vmatprep.subr.mxu0 0.0
        %278 = vmatpush2.msra.mxu0 0.0
        %279 = vmatprep.subr.mxu0 0.0
        %280 = vmatpush2.msra.mxu0 0.0
        %281 = vmatprep.subr.mxu0 0.0
        %282 = vmatpush2.msra.mxu0 0.0
        %283 = vmatprep.subr.mxu0 0.0
        %284 = vmatpush2.msra.mxu0 0.0
        %285 = vmatprep.subr.mxu0 0.0
        %286 = vmatpush2.msra.mxu0 0.0
        %287 = vmatprep.subr.mxu0 0.0
        %288 = vmatpush2.msra.mxu0 0.0
        %289 = vmatprep.subr.mxu0 0.0
        %290 = vmatpush2.msra.mxu0 0.0
        %291 = vmatprep.subr.mxu0 0.0
        %292 = vmatpush2.msra.mxu0 0.0
        %293 = vmatprep.subr.mxu0 0.0
        %294 = vmatpush2.msra.mxu0 0.0
        %295 = vmatprep.subr.mxu0 0.0
        %296 = vmatpush2.msra.mxu0 0.0
        %297 = vmatprep.subr.mxu0 0.0
        %298 = vmatpush2.msra.mxu0 0.0
        %299 = vmatprep.subr.mxu0 0.0
        %300 = vmatpush2.msra.mxu0 0.0
        %301 = vmatprep.subr.mxu0 0.0
        %302 = vmatpush2.msra.mxu0 0.0
        %303 = vmatprep.subr.mxu0 0.0
        %304 = vmatpush2.msra.mxu0 0.0
        %305 = vmatprep.mubr.f32.mxu0 0.0
        %306 = vmatmul.mubr.f32.gmra.mxu0 %v194
        %v307 = vpop.f32.mrf.mxu0
        %v308 = vadd.f32 0.0, %v307
        %v309 = vpop.f32.mrf.mxu0
        %310 = vmatprep.mubr.f32.mxu0 0.0
        %311 = vmatmul.mubr.f32.gmra.mxu0 %v197
        %v312 = vpop.f32.mrf.mxu0
        %v313 = vadd.f32 0.0, %v312
        %v314 = vpop.f32.mrf.mxu0
        %315 = vmatprep.mubr.f32.mxu0 0.0
        %316 = vmatmul.mubr.f32.gmra.mxu0 %v200
        %v317 = vpop.f32.mrf.mxu0
        %v318 = vadd.f32 0.0, %v317
        %v319 = vpop.f32.mrf.mxu0
        %320 = vmatprep.mubr.f32.mxu0 0.0
        %321 = vmatmul.mubr.f32.gmra.mxu0 %v203
        %v322 = vpop.f32.mrf.mxu0
        %v323 = vadd.f32 0.0, %v322
        %v324 = vpop.f32.mrf.mxu0
        %325 = vmatprep.mubr.f32.mxu0 0.0
        %326 = vmatmul.mubr.f32.gmra.mxu0 %v206
        %v327 = vpop.f32.mrf.mxu0
        %v328 = vadd.f32 0.0, %v327
        %v329 = vpop.f32.mrf.mxu0
        %330 = vmatprep.mubr.f32.mxu0 0.0
        %331 = vmatmul.mubr.f32.gmra.mxu0 %v209
        %v332 = vpop.f32.mrf.mxu0
        %v333 = vadd.f32 0.0, %v332
        %v334 = vpop.f32.mrf.mxu0
        %335 = vmatprep.mubr.f32.mxu0 0.0
        %336 = vmatmul.mubr.f32.gmra.mxu0 %v212
        %v337 = vpop.f32.mrf.mxu0
        %v338 = vadd.f32 0.0, %v337
        %v339 = vpop.f32.mrf.mxu0
        %340 = vmatprep.mubr.f32.mxu0 0.0
        %341 = vmatmul.mubr.f32.gmra.mxu0 %v215
        %v342 = vpop.f32.mrf.mxu0
        %v343 = vadd.f32 0.0, %v342
        %v344 = vpop.f32.mrf.mxu0
        %345 = vmatprep.mubr.f32.mxu0 0.0
        %346 = vmatmul.mubr.f32.gmra.mxu0 %v218
        %v347 = vpop.f32.mrf.mxu0
        %v348 = vadd.f32 0.0, %v347
        %v349 = vpop.f32.mrf.mxu0
        %350 = vmatprep.mubr.f32.mxu0 0.0
        %351 = vmatmul.mubr.f32.gmra.mxu0 %v221
        %v352 = vpop.f32.mrf.mxu0
        %v353 = vadd.f32 0.0, %v352
        %v354 = vpop.f32.mrf.mxu0
        %355 = vmatprep.mubr.f32.mxu0 0.0
        %356 = vmatmul.mubr.f32.gmra.mxu0 %v224
        %v357 = vpop.f32.mrf.mxu0
        %v358 = vadd.f32 0.0, %v357
        %v359 = vpop.f32.mrf.mxu0
        %360 = vmatprep.mubr.f32.mxu0 0.0
        %361 = vmatmul.mubr.f32.gmra.mxu0 %v227
        %v362 = vpop.f32.mrf.mxu0
        %v363 = vadd.f32 0.0, %v362
        %v364 = vpop.f32.mrf.mxu0
        %365 = vmatprep.mubr.f32.mxu0 0.0
        %366 = vmatmul.mubr.f32.gmra.mxu0 %v230
        %v367 = vpop.f32.mrf.mxu0
        %v368 = vadd.f32 0.0, %v367
        %v369 = vpop.f32.mrf.mxu0
        %370 = vmatprep.mubr.f32.mxu0 0.0
        %371 = vmatmul.mubr.f32.gmra.mxu0 %v233
        %v372 = vpop.f32.mrf.mxu0
        %v373 = vadd.f32 0.0, %v372
        %v374 = vpop.f32.mrf.mxu0
        %375 = vmatprep.mubr.f32.mxu0 0.0
        %376 = vmatmul.mubr.f32.gmra.mxu0 %v236
        %v377 = vpop.f32.mrf.mxu0
        %v378 = vadd.f32 0.0, %v377
        %v379 = vpop.f32.mrf.mxu0
        %380 = vmatprep.mubr.f32.mxu0 0.0
        %381 = vmatmul.mubr.f32.gmra.mxu0 %v239
        %v382 = vpop.f32.mrf.mxu0
        %v383 = vadd.f32 0.0, %v382
        %v384 = vpop.f32.mrf.mxu0
        %385 = vdwg.mxu0
        %386 = vst [vmem:[%s164] sm:$0xff] %v308
        %387 = vst [vmem:[%s164 + $0x10] sm:$0xff] %v313
        %388 = vst [vmem:[%s164 + $0x20] sm:$0xff] %v318
        %389 = vst [vmem:[%s164 + $0x30] sm:$0xff] %v323
        %390 = vst [vmem:[%s164 + $0x40] sm:$0xff] %v328
        %391 = vst [vmem:[%s164 + $0x50] sm:$0xff] %v333
        %392 = vst [vmem:[%s164 + $0x60] sm:$0xff] %v338
        %393 = vst [vmem:[%s164 + $0x70] sm:$0xff] %v343
        %394 = vst [vmem:[%s164 + $0x80] sm:$0xff] %v348
        %395 = vst [vmem:[%s164 + $0x90] sm:$0xff] %v353
        %396 = vst [vmem:[%s164 + $0xa0] sm:$0xff] %v358
        %397 = vst [vmem:[%s164 + $0xb0] sm:$0xff] %v363
        %398 = vst [vmem:[%s164 + $0xc0] sm:$0xff] %v368
        %399 = vst [vmem:[%s164 + $0xd0] sm:$0xff] %v373
        %400 = vst [vmem:[%s164 + $0xe0] sm:$0xff] %v378
        %401 = vst [vmem:[%s164 + $0xf0] sm:$0xff] %v383
        %v402 = vmul.f32 %v172, %v172
        %v403 = vmul.f32 %v173, %v173
        %v404 = vmul.f32 %v174, %v174
        %v405 = vmul.f32 %v175, %v175
        %v406 = vmul.f32 %v176, %v176
        %v407 = vmul.f32 %v177, %v177
        %v408 = vmul.f32 %v178, %v178
        %v409 = vmul.f32 %v179, %v179
        %v410 = vmul.f32 %v180, %v180
        %v411 = vmul.f32 %v181, %v181
        %v412 = vmul.f32 %v182, %v182
        %v413 = vmul.f32 %v183, %v183
        %v414 = vmul.f32 %v184, %v184
        %v415 = vmul.f32 %v185, %v185
        %v416 = vmul.f32 %v186, %v186
        %v417 = vmul.f32 %v187, %v187
        %v418 = vld [vmem:[%s2] sm:$0xff]
        %v419 = vld [vmem:[%s2 + $0x8] sm:$0xff]
        %v420 = vld [vmem:[%s2 + $0x10] sm:$0xff]
        %v421 = vld [vmem:[%s2 + $0x18] sm:$0xff]
        %v423 = vsel %vm192, %v402, 0
        %v426 = vsel %vm192, %v403, 0
        %v429 = vsel %vm192, %v404, 0
        %v432 = vsel %vm192, %v405, 0
        %v435 = vsel %vm192, %v406, 0
        %v438 = vsel %vm192, %v407, 0
        %v441 = vsel %vm192, %v408, 0
        %v444 = vsel %vm192, %v409, 0
        %v447 = vsel %vm192, %v410, 0
        %v450 = vsel %vm192, %v411, 0
        %v453 = vsel %vm192, %v412, 0
        %v456 = vsel %vm192, %v413, 0
        %v459 = vsel %vm192, %v414, 0
        %v462 = vsel %vm192, %v415, 0
        %v465 = vsel %vm192, %v416, 0
        %v468 = vsel %vm192, %v417, 0
        %470 = vmatprep.subr.mxu0 0.0
        %471 = vmatpush1.msra.mxu0 0.0
        %472 = vmatprep.subr.mxu0 0.0
        %473 = vmatpush1.msra.mxu0 0.0
        %474 = vmatprep.subr.mxu0 0.0
        %475 = vmatpush1.msra.mxu0 0.0
        %476 = vmatprep.subr.mxu0 0.0
        %477 = vmatpush1.msra.mxu0 0.0
        %478 = vmatprep.subr.mxu0 0.0
        %479 = vmatpush1.msra.mxu0 0.0
        %480 = vmatprep.subr.mxu0 0.0
        %481 = vmatpush1.msra.mxu0 0.0
        %482 = vmatprep.subr.mxu0 0.0
        %483 = vmatpush1.msra.mxu0 0.0
        %484 = vmatprep.subr.mxu0 0.0
        %485 = vmatpush1.msra.mxu0 0.0
        %486 = vmatprep.subr.mxu0 0.0
        %487 = vmatpush1.msra.mxu0 0.0
        %488 = vmatprep.subr.mxu0 0.0
        %489 = vmatpush1.msra.mxu0 0.0
        %490 = vmatprep.subr.mxu0 0.0
        %491 = vmatpush1.msra.mxu0 0.0
        %492 = vmatprep.subr.mxu0 0.0
        %493 = vmatpush1.msra.mxu0 0.0
        %494 = vmatprep.subr.mxu0 0.0
        %495 = vmatpush1.msra.mxu0 %v421
        %496 = vmatprep.subr.mxu0 0.0
        %497 = vmatpush1.msra.mxu0 %v420
        %498 = vmatprep.subr.mxu0 0.0
        %499 = vmatpush1.msra.mxu0 %v419
        %500 = vmatprep.subr.mxu0 0.0
        %501 = vmatpush1.msra.mxu0 %v418
        %502 = vmatprep.subr.mxu0 0.0
        %503 = vmatpush2.msra.mxu0 0.0
        %504 = vmatprep.subr.mxu0 0.0
        %505 = vmatpush2.msra.mxu0 0.0
        %506 = vmatprep.subr.mxu0 0.0
        %507 = vmatpush2.msra.mxu0 0.0
        %508 = vmatprep.subr.mxu0 0.0
        %509 = vmatpush2.msra.mxu0 0.0
        %510 = vmatprep.subr.mxu0 0.0
        %511 = vmatpush2.msra.mxu0 0.0
        %512 = vmatprep.subr.mxu0 0.0
        %513 = vmatpush2.msra.mxu0 0.0
        %514 = vmatprep.subr.mxu0 0.0
        %515 = vmatpush2.msra.mxu0 0.0
        %516 = vmatprep.subr.mxu0 0.0
        %517 = vmatpush2.msra.mxu0 0.0
        %518 = vmatprep.subr.mxu0 0.0
        %519 = vmatpush2.msra.mxu0 0.0
        %520 = vmatprep.subr.mxu0 0.0
        %521 = vmatpush2.msra.mxu0 0.0
        %522 = vmatprep.subr.mxu0 0.0
        %523 = vmatpush2.msra.mxu0 0.0
        %524 = vmatprep.subr.mxu0 0.0
        %525 = vmatpush2.msra.mxu0 0.0
        %526 = vmatprep.subr.mxu0 0.0
        %527 = vmatpush2.msra.mxu0 0.0
        %528 = vmatprep.subr.mxu0 0.0
        %529 = vmatpush2.msra.mxu0 0.0
        %530 = vmatprep.subr.mxu0 0.0
        %531 = vmatpush2.msra.mxu0 0.0
        %532 = vmatprep.subr.mxu0 0.0
        %533 = vmatpush2.msra.mxu0 0.0
        %534 = vmatprep.mubr.f32.mxu0 0.0
        %535 = vmatmul.mubr.f32.gmra.mxu0 %v423
        %v536 = vpop.f32.mrf.mxu0
        %v537 = vadd.f32 0.0, %v536
        %v538 = vpop.f32.mrf.mxu0
        %539 = vmatprep.mubr.f32.mxu0 0.0
        %540 = vmatmul.mubr.f32.gmra.mxu0 %v426
        %v541 = vpop.f32.mrf.mxu0
        %v542 = vadd.f32 0.0, %v541
        %v543 = vpop.f32.mrf.mxu0
        %544 = vmatprep.mubr.f32.mxu0 0.0
        %545 = vmatmul.mubr.f32.gmra.mxu0 %v429
        %v546 = vpop.f32.mrf.mxu0
        %v547 = vadd.f32 0.0, %v546
        %v548 = vpop.f32.mrf.mxu0
        %549 = vmatprep.mubr.f32.mxu0 0.0
        %550 = vmatmul.mubr.f32.gmra.mxu0 %v432
        %v551 = vpop.f32.mrf.mxu0
        %v552 = vadd.f32 0.0, %v551
        %v553 = vpop.f32.mrf.mxu0
        %554 = vmatprep.mubr.f32.mxu0 0.0
        %555 = vmatmul.mubr.f32.gmra.mxu0 %v435
        %v556 = vpop.f32.mrf.mxu0
        %v557 = vadd.f32 0.0, %v556
        %v558 = vpop.f32.mrf.mxu0
        %559 = vmatprep.mubr.f32.mxu0 0.0
        %560 = vmatmul.mubr.f32.gmra.mxu0 %v438
        %v561 = vpop.f32.mrf.mxu0
        %v562 = vadd.f32 0.0, %v561
        %v563 = vpop.f32.mrf.mxu0
        %564 = vmatprep.mubr.f32.mxu0 0.0
        %565 = vmatmul.mubr.f32.gmra.mxu0 %v441
        %v566 = vpop.f32.mrf.mxu0
        %v567 = vadd.f32 0.0, %v566
        %v568 = vpop.f32.mrf.mxu0
        %569 = vmatprep.mubr.f32.mxu0 0.0
        %570 = vmatmul.mubr.f32.gmra.mxu0 %v444
        %v571 = vpop.f32.mrf.mxu0
        %v572 = vadd.f32 0.0, %v571
        %v573 = vpop.f32.mrf.mxu0
        %574 = vmatprep.mubr.f32.mxu0 0.0
        %575 = vmatmul.mubr.f32.gmra.mxu0 %v447
        %v576 = vpop.f32.mrf.mxu0
        %v577 = vadd.f32 0.0, %v576
        %v578 = vpop.f32.mrf.mxu0
        %579 = vmatprep.mubr.f32.mxu0 0.0
        %580 = vmatmul.mubr.f32.gmra.mxu0 %v450
        %v581 = vpop.f32.mrf.mxu0
        %v582 = vadd.f32 0.0, %v581
        %v583 = vpop.f32.mrf.mxu0
        %584 = vmatprep.mubr.f32.mxu0 0.0
        %585 = vmatmul.mubr.f32.gmra.mxu0 %v453
        %v586 = vpop.f32.mrf.mxu0
        %v587 = vadd.f32 0.0, %v586
        %v588 = vpop.f32.mrf.mxu0
        %589 = vmatprep.mubr.f32.mxu0 0.0
        %590 = vmatmul.mubr.f32.gmra.mxu0 %v456
        %v591 = vpop.f32.mrf.mxu0
        %v592 = vadd.f32 0.0, %v591
        %v593 = vpop.f32.mrf.mxu0
        %594 = vmatprep.mubr.f32.mxu0 0.0
        %595 = vmatmul.mubr.f32.gmra.mxu0 %v459
        %v596 = vpop.f32.mrf.mxu0
        %v597 = vadd.f32 0.0, %v596
        %v598 = vpop.f32.mrf.mxu0
        %599 = vmatprep.mubr.f32.mxu0 0.0
        %600 = vmatmul.mubr.f32.gmra.mxu0 %v462
        %v601 = vpop.f32.mrf.mxu0
        %v602 = vadd.f32 0.0, %v601
        %v603 = vpop.f32.mrf.mxu0
        %604 = vmatprep.mubr.f32.mxu0 0.0
        %605 = vmatmul.mubr.f32.gmra.mxu0 %v465
        %v606 = vpop.f32.mrf.mxu0
        %v607 = vadd.f32 0.0, %v606
        %v608 = vpop.f32.mrf.mxu0
        %609 = vmatprep.mubr.f32.mxu0 0.0
        %610 = vmatmul.mubr.f32.gmra.mxu0 %v468
        %v611 = vpop.f32.mrf.mxu0
        %v612 = vadd.f32 0.0, %v611
        %v613 = vpop.f32.mrf.mxu0
        %614 = vdwg.mxu0
        %615 = vst [vmem:[%s164 + $0x8] sm:$0xff] %v537
        %616 = vst [vmem:[%s164 + $0x18] sm:$0xff] %v542
        %617 = vst [vmem:[%s164 + $0x28] sm:$0xff] %v547
        %618 = vst [vmem:[%s164 + $0x38] sm:$0xff] %v552
        %619 = vst [vmem:[%s164 + $0x48] sm:$0xff] %v557
        %620 = vst [vmem:[%s164 + $0x58] sm:$0xff] %v562
        %621 = vst [vmem:[%s164 + $0x68] sm:$0xff] %v567
        %622 = vst [vmem:[%s164 + $0x78] sm:$0xff] %v572
        %623 = vst [vmem:[%s164 + $0x88] sm:$0xff] %v577
        %624 = vst [vmem:[%s164 + $0x98] sm:$0xff] %v582
        %625 = vst [vmem:[%s164 + $0xa8] sm:$0xff] %v587
        %626 = vst [vmem:[%s164 + $0xb8] sm:$0xff] %v592
        %627 = vst [vmem:[%s164 + $0xc8] sm:$0xff] %v597
        %628 = vst [vmem:[%s164 + $0xd8] sm:$0xff] %v602
        %629 = vst [vmem:[%s164 + $0xe8] sm:$0xff] %v607
        %630 = vst [vmem:[%s164 + $0xf8] sm:$0xff] %v612
        %s631 = sand.u32 %s93, 1
        %s632 = scalar_lea.sflag [#allocation3], %s631
        %s633 = sand.u32 %s93, 1
        %s634 = smul.addr %s633, 256
        %s635 = scalar_lea.vmem [#allocation2], %s634
        // Predicated region
        $region33: #{tpu_custom_call.1} parent=31 // pred_check
          %p636 = pneg %p103
        $region34: #{tpu_custom_call.1} parent=31 // pred_check_branch
          %638 = sbr.rel (%p636) target = $region36
        $region35: #{tpu_custom_call.1} parent=31 // pred_region
          %s639 = smul.u32 16, %s17
          %s641 = ssub.s32 4096, 4096
          %642 = vsyncadd %s632, %s641
          %s643 = smul.addr %s639, 2
          %s644 = smul.addr %s643, 128
          %s645 = scalar_lea.hbm %s3, %s644
          %s646 = sshll.u32 %s635, 4
          %s647 = int_to_ptr.vmem [resolvable:$true] %s646
          %652 = dma.vmem_to_hbm [thread:$0]  %s647, 4096, %s645, %s632, 256, 256, 16
        $region36: #{tpu_custom_call.1} parent=31 // pred_fallthru
          _
      $region32: #{tpu_custom_call.1} parent=5 // pred_fallthru
        _
      %p653 = scmp.le.s32.totalorder 2, %s12
      // Predicated region
      $region37: #{tpu_custom_call.1} parent=5 // pred_check
        %p654 = pneg %p653
      $region38: #{tpu_custom_call.1} parent=5 // pred_check_branch
        %656 = sbr.rel (%p654) target = $region40
      $region39: #{tpu_custom_call.1} parent=5 // pred_region
        %s657 = ssub.s32 %s12, 2
        // Predicated region
        $region41: #{tpu_custom_call.1} parent=39 // pred_check
          %p658 = pneg %p109
        $region42: #{tpu_custom_call.1} parent=39 // pred_check_branch
          %660 = sbr.rel (%p658) target = $region44
        $region43: #{tpu_custom_call.1} parent=39 // pred_region
          %s661 = sand.u32 %s94, 1
          %s662 = scalar_lea.sflag [#allocation3], %s661
          %s663 = sand.u32 %s94, 1
          %s664 = smul.addr %s663, 256
          %s665 = scalar_lea.vmem [#allocation2], %s664
          %666 = dma.done %s662, 4096
        $region44: #{tpu_custom_call.1} parent=39 // pred_fallthru
          _
      $region40: #{tpu_custom_call.1} parent=5 // pred_fallthru
        _
    $region6: #{tpu_custom_call.1} parent=1 // loop_footer
      %s16 = sadd.s32 1, %s12
    $region7: #{tpu_custom_call.1} parent=1 // loop_footer_branch
      %11 = sbr.rel target = $region3
    $region8: #{tpu_custom_call.1} parent=1 // loop_exit
      _
    %667 = vsyncpa [#allocation3], 1
    %s668 = scalar_lea.sflag [#allocation3], 1
    %669 = vsyncpa %s668, 1

</llo_original>
